<compile_context>
chip_gen: v5e
topology: v5e:2x2
jax: 0.10.0
libtpu: 0.0.40
codegen_flags: <defaults>
</compile_context>

<pallas_src>
import functools

import jax
import jax.numpy as jnp
import numpy as np
from jax import lax
from jax.experimental import pallas as pl
from jax.experimental.pallas import tpu as pltpu

P_DROP = 0.3
_KEEP_SCALE = 1.0 / (1.0 - P_DROP)
_DROP_THRESHOLD = np.uint32(int(P_DROP * (1 << 32)))  # drop if hash < threshold

_LANE = 128
_SUBLANE = 8


def _keep_mask(shape, seed_u32, layer_idx, row_offset):
    """Stateless per-element keep mask via a murmur3-style integer hash."""
    rows = (lax.broadcasted_iota(jnp.int32, shape, 0) + row_offset).astype(jnp.uint32)
    cols = lax.broadcasted_iota(jnp.int32, shape, 1).astype(jnp.uint32)
    h = (rows * jnp.uint32(0x9E3779B9)) ^ (cols * jnp.uint32(0xC2B2AE3D))
    h = h ^ (seed_u32 * jnp.uint32(0x85EBCA77) + jnp.uint32(layer_idx * 0x27D4EB2F))
    # murmur3 fmix32 finalizer (modular uint32 arithmetic)
    h = h ^ (h >> 16)
    h = h * jnp.uint32(0x85EBCA6B)
    h = h ^ (h >> 13)
    h = h * jnp.uint32(0xC2B2AE35)
    h = h ^ (h >> 16)
    return h >= _DROP_THRESHOLD


def _dropout(h, seed_u32, layer_idx, row_offset, train):
    if not train:
        return h
    keep = _keep_mask(h.shape, seed_u32, layer_idx, row_offset)
    return jnp.where(keep, h * jnp.float32(_KEEP_SCALE), jnp.float32(0.0))


def decoder_kernel(seed_ref,                      # scalar prefetch (SMEM)
                   x_ref, w1_ref, b1_ref, w2_ref, b2_ref,
                   w3_ref, b3_ref, w4_ref, b4_ref,
                   out_ref, *, train, block_m):
    seed_u32 = seed_ref[0].astype(jnp.uint32)
    row_offset = pl.program_id(0) * block_m       # global row index of this tile

    def linear(h, w_ref, b_ref):
        # bf16 operands on the MXU, f32 accumulation, f32 bias add.
        return jnp.dot(h.astype(jnp.bfloat16), w_ref[...],
                       preferred_element_type=jnp.float32) + b_ref[...]

    h = x_ref[...]
    h = _dropout(jnp.maximum(linear(h, w1_ref, b1_ref), 0.0),
                 seed_u32, 0, row_offset, train)
    h = _dropout(jnp.maximum(linear(h, w2_ref, b2_ref), 0.0),
                 seed_u32, 1, row_offset, train)
    h = _dropout(jnp.maximum(linear(h, w3_ref, b3_ref), 0.0),
                 seed_u32, 2, row_offset, train)
    out_ref[...] = linear(h, w4_ref, b4_ref).astype(out_ref.dtype)


def _round_up(v, m):
    return (v + m - 1) // m * m


def _pad2(a, rows, cols):
    return jnp.pad(a, ((0, rows - a.shape[0]), (0, cols - a.shape[1])))


def decoder_forward(x, params, *, seed=0, train=False, block_m=256):
    """x: (B, latent_dim) f32.  params: (w1,b1,...,w4,b4) with w as (in, out)."""
    w1, b1, w2, b2, w3, b3, w4, b4 = params
    B, L = x.shape
    H = w1.shape[1]
    O = w4.shape[1]

    # Lane-dense padding of every feature dim (zeros are exact no-ops).
    Lp = _round_up(L, _LANE)
    Hp = _round_up(H, _LANE)
    Op = _round_up(O, _LANE)

    # Batch tile: as large as requested, multiple of 8 sublanes.
    TM = min(block_m, _round_up(B, _SUBLANE))
    Bp = _round_up(B, TM)
    grid = (Bp // TM,)

    xp = _pad2(x.astype(jnp.float32), Bp, Lp)
    # Weights stored bf16 in HBM (halves DMA + VMEM); biases stay f32 rows.
    w1p = _pad2(w1, Lp, Hp).astype(jnp.bfloat16)
    w2p = _pad2(w2, Hp, Hp).astype(jnp.bfloat16)
    w3p = _pad2(w3, Hp, Hp).astype(jnp.bfloat16)
    w4p = _pad2(w4, Hp, Op).astype(jnp.bfloat16)
    b1p = jnp.pad(b1, (0, Hp - H)).reshape(1, Hp).astype(jnp.float32)
    b2p = jnp.pad(b2, (0, Hp - H)).reshape(1, Hp).astype(jnp.float32)
    b3p = jnp.pad(b3, (0, Hp - H)).reshape(1, Hp).astype(jnp.float32)
    b4p = jnp.pad(b4, (0, Op - O)).reshape(1, Op).astype(jnp.float32)
    seed_arr = jnp.array([seed], dtype=jnp.int32)

    def resident(shape):
        # Constant block index -> fetched once, VMEM-resident across grid steps.
        return pl.BlockSpec(shape, lambda i, s: (0, 0))

    kernel = functools.partial(decoder_kernel, train=train, block_m=TM)

    out = pl.pallas_call(
        kernel,
        out_shape=jax.ShapeDtypeStruct((Bp, Op), jnp.float32),
        grid_spec=pltpu.PrefetchScalarGridSpec(
            num_scalar_prefetch=1,
            grid=grid,
            in_specs=[
                pl.BlockSpec((TM, Lp), lambda i, s: (i, 0)),   # x: batch-tiled
                resident((Lp, Hp)), resident((1, Hp)),
                resident((Hp, Hp)), resident((1, Hp)),
                resident((Hp, Hp)), resident((1, Hp)),
                resident((Hp, Op)), resident((1, Op)),
            ],
            out_specs=pl.BlockSpec((TM, Op), lambda i, s: (i, 0)),
        ),
        compiler_params=pltpu.CompilerParams(
            # batch tiles are independent -> shard across v7x's 2 TCs
            dimension_semantics=("parallel",),
            # TODO(synk): for large hidden_size, K-stream W2/W3 and re-derive
            # this limit for v7x's 64 MiB VMEM instead of whole-weight blocks.
            vmem_limit_bytes=32 * 1024 * 1024,
        ),
    )(seed_arr, xp, w1p, b1p, w2p, b2p, w3p, b3p, w4p, b4p)

    return out[:B, :O]


def init_params(key, latent_dim, hidden_size, output_size):
    """PyTorch nn.Linear default init: U(-1/sqrt(fan_in), 1/sqrt(fan_in))."""
    dims = [(latent_dim, hidden_size), (hidden_size, hidden_size),
            (hidden_size, hidden_size), (hidden_size, output_size)]
    params = []
    for (fan_in, fan_out) in dims:
        key, kw, kb = jax.random.split(key, 3)
        bound = 1.0 / np.sqrt(fan_in)
        # stored as (in, out) == transposed PyTorch weight
        w = jax.random.uniform(kw, (fan_in, fan_out), jnp.float32, -bound, bound)
        b = jax.random.uniform(kb, (fan_out,), jnp.float32, -bound, bound)
        params += [w, b]
    return tuple(params)


def ref_forward_eval(x, params):
    """Pure-JAX eval reference with the same bf16-operand / f32-accum matmuls."""
    w1, b1, w2, b2, w3, b3, w4, b4 = params

    def lin(h, w, b):
        return jnp.dot(h.astype(jnp.bfloat16), w.astype(jnp.bfloat16),
                       preferred_element_type=jnp.float32) + b

    h = jnp.maximum(lin(x, w1, b1), 0.0)
    h = jnp.maximum(lin(h, w2, b2), 0.0)
    h = jnp.maximum(lin(h, w3, b3), 0.0)
    return lin(h, w4, b4)


if __name__ == "__main__":
    BATCH, LATENT, HIDDEN, OUTPUT = 37, 16, 128, 64   # odd batch exercises padding
    BLOCK_M = 16                                      # -> 3 batch tiles in the grid

    key = jax.random.PRNGKey(0)
    kx, kp = jax.random.split(key)
    x = jax.random.normal(kx, (BATCH, LATENT), jnp.float32)
    params = init_params(kp, LATENT, HIDDEN, OUTPUT)

    # Eval path (dropout = identity): must match the pure-JAX reference.
    out_eval = decoder_forward(x, params, train=False, block_m=BLOCK_M)
    jax.block_until_ready(out_eval)
    ref = ref_forward_eval(x, params)
    np.testing.assert_allclose(np.asarray(out_eval), np.asarray(ref),
                               rtol=1e-3, atol=1e-3)

    # Training path (stochastic inverted dropout, per-tile-distinct masks).
    out_train = decoder_forward(x, params, seed=1234, train=True, block_m=BLOCK_M)
    jax.block_until_ready(out_train)
    assert out_train.shape == (BATCH, OUTPUT)
    assert bool(jnp.all(jnp.isfinite(out_train)))

    print("KERNEL_OK")
</pallas_src>

<mosaic_0001>
module attributes {stable_mosaic.version = 11 : i64} {
  func.func @decoder_kernel(%arg0: i32, %arg1: memref<1xi32, #tpu.memory_space<smem>>, %arg2: memref<16x128xf32, #tpu.memory_space<vmem>>, %arg3: memref<128x128xbf16, #tpu.memory_space<vmem>>, %arg4: memref<1x128xf32, #tpu.memory_space<vmem>>, %arg5: memref<128x128xbf16, #tpu.memory_space<vmem>>, %arg6: memref<1x128xf32, #tpu.memory_space<vmem>>, %arg7: memref<128x128xbf16, #tpu.memory_space<vmem>>, %arg8: memref<1x128xf32, #tpu.memory_space<vmem>>, %arg9: memref<128x128xbf16, #tpu.memory_space<vmem>>, %arg10: memref<1x128xf32, #tpu.memory_space<vmem>>, %arg11: memref<16x128xf32, #tpu.memory_space<vmem>>) attributes {dimension_semantics = [#tpu.dimension_semantics<parallel>], iteration_bounds = array<i64: 3>, scalar_prefetch = 1 : i64, scratch_operands = 0 : i64, tpu.core_type = #tpu.core_type<tc>, window_params = [{transform_indices = @transform_0, window_bounds = array<i64: 16, 128>}, {pipeline_mode = #tpu.pipeline_mode<synchronous>, transform_indices = @transform_1, window_bounds = array<i64: 128, 128>}, {pipeline_mode = #tpu.pipeline_mode<synchronous>, transform_indices = @transform_2, window_bounds = array<i64: 1, 128>}, {pipeline_mode = #tpu.pipeline_mode<synchronous>, transform_indices = @transform_3, window_bounds = array<i64: 128, 128>}, {pipeline_mode = #tpu.pipeline_mode<synchronous>, transform_indices = @transform_4, window_bounds = array<i64: 1, 128>}, {pipeline_mode = #tpu.pipeline_mode<synchronous>, transform_indices = @transform_5, window_bounds = array<i64: 128, 128>}, {pipeline_mode = #tpu.pipeline_mode<synchronous>, transform_indices = @transform_6, window_bounds = array<i64: 1, 128>}, {pipeline_mode = #tpu.pipeline_mode<synchronous>, transform_indices = @transform_7, window_bounds = array<i64: 128, 128>}, {pipeline_mode = #tpu.pipeline_mode<synchronous>, transform_indices = @transform_8, window_bounds = array<i64: 1, 128>}, {transform_indices = @transform_9, window_bounds = array<i64: 16, 128>}]} {
    %c0 = arith.constant 0 : index
    %c0_0 = arith.constant 0 : index
    %0 = vector.load %arg2[%c0, %c0_0] : memref<16x128xf32, #tpu.memory_space<vmem>>, vector<16x128xf32>
    %1 = arith.truncf %0 : vector<16x128xf32> to vector<16x128xbf16>
    %c0_1 = arith.constant 0 : index
    %c0_2 = arith.constant 0 : index
    %2 = vector.load %arg3[%c0_1, %c0_2] : memref<128x128xbf16, #tpu.memory_space<vmem>>, vector<128x128xbf16>
    %cst = arith.constant dense<0.000000e+00> : vector<16x128xf32>
    %3 = tpu.matmul %1, %2, %cst {dimension_numbers = #tpu.dot_dimension_numbers<[1], [0], [0], [1], [0, 0, 1, 1], [], []>} : vector<16x128xbf16>, vector<128x128xbf16>, vector<16x128xf32> -> vector<16x128xf32>
    %c0_3 = arith.constant 0 : index
    %c0_4 = arith.constant 0 : index
    %4 = vector.load %arg4[%c0_3, %c0_4] : memref<1x128xf32, #tpu.memory_space<vmem>>, vector<1x128xf32>
    %5 = vector.broadcast %4 : vector<1x128xf32> to vector<16x128xf32>
    %6 = arith.addf %3, %5 : vector<16x128xf32>
    %cst_5 = arith.constant 0.000000e+00 : f32
    %7 = vector.broadcast %cst_5 : f32 to vector<16x128xf32>
    %8 = arith.maximumf %6, %7 : vector<16x128xf32>
    %9 = arith.truncf %8 : vector<16x128xf32> to vector<16x128xbf16>
    %c0_6 = arith.constant 0 : index
    %c0_7 = arith.constant 0 : index
    %10 = vector.load %arg5[%c0_6, %c0_7] : memref<128x128xbf16, #tpu.memory_space<vmem>>, vector<128x128xbf16>
    %cst_8 = arith.constant dense<0.000000e+00> : vector<16x128xf32>
    %11 = tpu.matmul %9, %10, %cst_8 {dimension_numbers = #tpu.dot_dimension_numbers<[1], [0], [0], [1], [0, 0, 1, 1], [], []>} : vector<16x128xbf16>, vector<128x128xbf16>, vector<16x128xf32> -> vector<16x128xf32>
    %c0_9 = arith.constant 0 : index
    %c0_10 = arith.constant 0 : index
    %12 = vector.load %arg6[%c0_9, %c0_10] : memref<1x128xf32, #tpu.memory_space<vmem>>, vector<1x128xf32>
    %13 = vector.broadcast %12 : vector<1x128xf32> to vector<16x128xf32>
    %14 = arith.addf %11, %13 : vector<16x128xf32>
    %cst_11 = arith.constant 0.000000e+00 : f32
    %15 = vector.broadcast %cst_11 : f32 to vector<16x128xf32>
    %16 = arith.maximumf %14, %15 : vector<16x128xf32>
    %17 = arith.truncf %16 : vector<16x128xf32> to vector<16x128xbf16>
    %c0_12 = arith.constant 0 : index
    %c0_13 = arith.constant 0 : index
    %18 = vector.load %arg7[%c0_12, %c0_13] : memref<128x128xbf16, #tpu.memory_space<vmem>>, vector<128x128xbf16>
    %cst_14 = arith.constant dense<0.000000e+00> : vector<16x128xf32>
    %19 = tpu.matmul %17, %18, %cst_14 {dimension_numbers = #tpu.dot_dimension_numbers<[1], [0], [0], [1], [0, 0, 1, 1], [], []>} : vector<16x128xbf16>, vector<128x128xbf16>, vector<16x128xf32> -> vector<16x128xf32>
    %c0_15 = arith.constant 0 : index
    %c0_16 = arith.constant 0 : index
    %20 = vector.load %arg8[%c0_15, %c0_16] : memref<1x128xf32, #tpu.memory_space<vmem>>, vector<1x128xf32>
    %21 = vector.broadcast %20 : vector<1x128xf32> to vector<16x128xf32>
    %22 = arith.addf %19, %21 : vector<16x128xf32>
    %cst_17 = arith.constant 0.000000e+00 : f32
    %23 = vector.broadcast %cst_17 : f32 to vector<16x128xf32>
    %24 = arith.maximumf %22, %23 : vector<16x128xf32>
    %25 = arith.truncf %24 : vector<16x128xf32> to vector<16x128xbf16>
    %c0_18 = arith.constant 0 : index
    %c0_19 = arith.constant 0 : index
    %26 = vector.load %arg9[%c0_18, %c0_19] : memref<128x128xbf16, #tpu.memory_space<vmem>>, vector<128x128xbf16>
    %cst_20 = arith.constant dense<0.000000e+00> : vector<16x128xf32>
    %27 = tpu.matmul %25, %26, %cst_20 {dimension_numbers = #tpu.dot_dimension_numbers<[1], [0], [0], [1], [0, 0, 1, 1], [], []>} : vector<16x128xbf16>, vector<128x128xbf16>, vector<16x128xf32> -> vector<16x128xf32>
    %c0_21 = arith.constant 0 : index
    %c0_22 = arith.constant 0 : index
    %28 = vector.load %arg10[%c0_21, %c0_22] : memref<1x128xf32, #tpu.memory_space<vmem>>, vector<1x128xf32>
    %29 = vector.broadcast %28 : vector<1x128xf32> to vector<16x128xf32>
    %30 = arith.addf %27, %29 : vector<16x128xf32>
    %c0_23 = arith.constant 0 : index
    %c0_24 = arith.constant 0 : index
    %31 = vector.load %arg11[%c0_23, %c0_24] : memref<16x128xf32, #tpu.memory_space<vmem>>, vector<16x128xf32>
    tpu.vector_store %arg11[%c0_23, %c0_24], %30 {strides = array<i32>} : memref<16x128xf32, #tpu.memory_space<vmem>>, vector<16x128xf32>,
    return
  }
  func.func @transform_0(%arg0: i32, %arg1: memref<1xi32, #tpu.memory_space<smem>>) -> (i32, i32) {
    %c0_i32 = arith.constant 0 : i32
    %c0_i32_0 = arith.constant 0 : i32
    return %arg0, %c0_i32 : i32, i32
  }
  func.func @transform_1(%arg0: i32, %arg1: memref<1xi32, #tpu.memory_space<smem>>) -> (i32, i32) {
    %c0_i32 = arith.constant 0 : i32
    %c0_i32_0 = arith.constant 0 : i32
    %c0_i32_1 = arith.constant 0 : i32
    return %c0_i32, %c0_i32_0 : i32, i32
  }
  func.func @transform_2(%arg0: i32, %arg1: memref<1xi32, #tpu.memory_space<smem>>) -> (i32, i32) {
    %c0_i32 = arith.constant 0 : i32
    %c0_i32_0 = arith.constant 0 : i32
    %c0_i32_1 = arith.constant 0 : i32
    return %c0_i32, %c0_i32_0 : i32, i32
  }
  func.func @transform_3(%arg0: i32, %arg1: memref<1xi32, #tpu.memory_space<smem>>) -> (i32, i32) {
    %c0_i32 = arith.constant 0 : i32
    %c0_i32_0 = arith.constant 0 : i32
    %c0_i32_1 = arith.constant 0 : i32
    return %c0_i32, %c0_i32_0 : i32, i32
  }
  func.func @transform_4(%arg0: i32, %arg1: memref<1xi32, #tpu.memory_space<smem>>) -> (i32, i32) {
    %c0_i32 = arith.constant 0 : i32
    %c0_i32_0 = arith.constant 0 : i32
    %c0_i32_1 = arith.constant 0 : i32
    return %c0_i32, %c0_i32_0 : i32, i32
  }
  func.func @transform_5(%arg0: i32, %arg1: memref<1xi32, #tpu.memory_space<smem>>) -> (i32, i32) {
    %c0_i32 = arith.constant 0 : i32
    %c0_i32_0 = arith.constant 0 : i32
    %c0_i32_1 = arith.constant 0 : i32
    return %c0_i32, %c0_i32_0 : i32, i32
  }
  func.func @transform_6(%arg0: i32, %arg1: memref<1xi32, #tpu.memory_space<smem>>) -> (i32, i32) {
    %c0_i32 = arith.constant 0 : i32
    %c0_i32_0 = arith.constant 0 : i32
    %c0_i32_1 = arith.constant 0 : i32
    return %c0_i32, %c0_i32_0 : i32, i32
  }
  func.func @transform_7(%arg0: i32, %arg1: memref<1xi32, #tpu.memory_space<smem>>) -> (i32, i32) {
    %c0_i32 = arith.constant 0 : i32
    %c0_i32_0 = arith.constant 0 : i32
    %c0_i32_1 = arith.constant 0 : i32
    return %c0_i32, %c0_i32_0 : i32, i32
  }
  func.func @transform_8(%arg0: i32, %arg1: memref<1xi32, #tpu.memory_space<smem>>) -> (i32, i32) {
    %c0_i32 = arith.constant 0 : i32
    %c0_i32_0 = arith.constant 0 : i32
    %c0_i32_1 = arith.constant 0 : i32
    return %c0_i32, %c0_i32_0 : i32, i32
  }
  func.func @transform_9(%arg0: i32, %arg1: memref<1xi32, #tpu.memory_space<smem>>) -> (i32, i32) {
    %c0_i32 = arith.constant 0 : i32
    %c0_i32_0 = arith.constant 0 : i32
    return %arg0, %c0_i32 : i32, i32
  }
}

</mosaic_0001>

<llo_original>
// kernel: tpu_custom_call.1
$region0: #{tpu_custom_call.1}
  #allocation0 [shape = 'u32[]', space=smem, size = 0x4, offset = 0x4, fixed_abs, tag = 'smem constant byte address 0x4 - core index']
  #allocation1 [shape = 'u32[72,128]{1,0:T(1,128)}', space=vmem, size = 0x9000, scoped, tag = 'internal scratch']
  #allocation2 [shape = 's32[1]{0}', space=sflag, size = 0x4, scoped, tag = 'scoped memory for tpu_custom_call.1']
  #allocation3 [shape = 's32[1]{0:T(128)S(6)}', space=smem, size = 0x200, scoped, tag = 'prefetched SMEM operand 0']
  %s0 = inlined_call_operand.<no memory space> [shape: s32[1], index: 0, kind: input, shape index: {}]
  %s1 = inlined_call_operand.hbm [shape: f32[48,128], index: 1, kind: input, shape index: {}]
  %s2 = inlined_call_operand.hbm [shape: bf16[128,128], index: 2, kind: input, shape index: {}]
  %s3 = inlined_call_operand.vmem [shape: f32[1,128], index: 3, kind: input, shape index: {}]
  %s4 = inlined_call_operand.hbm [shape: bf16[128,128], index: 4, kind: input, shape index: {}]
  %s5 = inlined_call_operand.vmem [shape: f32[1,128], index: 5, kind: input, shape index: {}]
  %s6 = inlined_call_operand.hbm [shape: bf16[128,128], index: 6, kind: input, shape index: {}]
  %s7 = inlined_call_operand.vmem [shape: f32[1,128], index: 7, kind: input, shape index: {}]
  %s8 = inlined_call_operand.hbm [shape: bf16[128,128], index: 8, kind: input, shape index: {}]
  %s9 = inlined_call_operand.vmem [shape: f32[1,128], index: 9, kind: input, shape index: {}]
  %s10 = inlined_call_operand.hbm [shape: f32[48,128], index: 10, kind: output, shape index: {}]
  %s11 = sld [smem:[#allocation0]]
  $region89: #{tpu_custom_call.1} parent=0
    _
  %s13 = ssub.s32 1, %s11
  %s14 = scalar_select 0, %s13, %s11
  %15 = sst [smem:[#allocation3]] %s0
  $region1: #{tpu_custom_call.1} parent=0
    #allocation4 [shape = 'u8[16384]{0}', space=vmem, size = 0x4000, scoped, tag = 'input window, operand 1']
    #allocation5 [shape = 's32[2]{0}', space=sflag, size = 0x8, scoped, tag = 'scoped memory for tpu_custom_call.1']
    #allocation6 [shape = 's32[2]{0}', space=sflag, size = 0x8, scoped, tag = 'scoped memory for tpu_custom_call.1']
    #allocation7 [shape = 'u8[32768]{0}', space=vmem, size = 0x8000, scoped, tag = 'input window, operand 2, single buffered']
    #allocation8 [shape = 's32[1]{0}', space=sflag, size = 0x4, scoped, tag = 'scoped memory for tpu_custom_call.1']
    #allocation9 [shape = 'u8[32768]{0}', space=vmem, size = 0x8000, scoped, tag = 'input window, operand 4, single buffered']
    #allocation10 [shape = 'u8[32768]{0}', space=vmem, size = 0x8000, scoped, tag = 'input window, operand 6, single buffered']
    #allocation11 [shape = 's32[1]{0}', space=sflag, size = 0x4, scoped, tag = 'scoped memory for tpu_custom_call.1']
    #allocation12 [shape = 'u8[32768]{0}', space=vmem, size = 0x8000, scoped, tag = 'input window, operand 8, single buffered']
    #allocation13 [shape = 'u8[16384]{0}', space=vmem, size = 0x4000, scoped, tag = 'output window, operand 0']
    %16 = vsyncpa [#allocation5], 0
    %s17 = scalar_lea.sflag [#allocation5], 1
    %18 = vsyncpa %s17, 0
    %19 = vsyncpa [#allocation8], 0
    %20 = vsyncpa [#allocation11], 0
    %21 = vsyncpa [#allocation6], 0
    %s22 = scalar_lea.sflag [#allocation6], 1
    %23 = vsyncpa %s22, 0
    loop: start=0, step=1, limit=5
    $region2: #{tpu_custom_call.1} parent=1 // loop_pre_header
      _
    $region3: #{tpu_custom_call.1} parent=1 // loop_header
      %s25 = sphi 0, %s29
      %p26 = scmp.ge.s32.totalorder %s25, 5
      %s35 = sphi 0, %s37
      %s38 = sphi 0, %s35
      %s39 = sphi 0, %s38
      %s55 = sphi 0, %s39
      %s59 = sphi 0, %s59
      %s61 = sphi 0, %s59
      %s62 = sphi 0, %s61
      %s76 = sphi 0, %s62
      %s80 = sphi 0, %s80
      %s82 = sphi 0, %s80
      %s83 = sphi 0, %s82
      %s97 = sphi 0, %s83
      %s101 = sphi 0, %s101
      %s103 = sphi 0, %s101
      %s104 = sphi 0, %s103
      %s118 = sphi 0, %s104
      %s122 = sphi 0, %s122
      %s124 = sphi 0, %s122
      %s125 = sphi 0, %s124
      %s139 = sphi 0, %s125
      %s143 = sphi 0, %s143
      %s145 = sphi 0, %s143
      %s146 = sphi 0, %s145
      %s160 = sphi 0, %s146
      %s164 = sphi 0, %s164
      %s166 = sphi 0, %s164
      %s167 = sphi 0, %s166
      %s181 = sphi 0, %s167
      %s185 = sphi 0, %s185
      %s187 = sphi 0, %s185
      %s188 = sphi 0, %s187
      %s202 = sphi 0, %s188
      %s206 = sphi 0, %s206
      %s208 = sphi 0, %s206
      %s209 = sphi 0, %s208
      %s223 = sphi 0, %s209
      %s229 = sphi 0, %s231
      %s232 = sphi 0, %s229
      %s233 = sphi 0, %s232
      %s249 = sphi 0, %s233
    $region4: #{tpu_custom_call.1} parent=1 // loop_header_branch
      %28 = sbr.rel (%p26) target = $region8
    $region5: #{tpu_custom_call.1} parent=1 // loop_body
      %s30 = ssub.s32 %s25, 1
      %s31 = ssub.s32 %s25, 2
      %s32 = sadd.s32 %s25, 1
      %s33 = ssub.s32 %s25, %s32
      %p34 = scmp.eq.s32.totalorder %s33, 0
      %s36 = sadd.s32 %s35, 1
      %s37 = scalar_select %p34, %s35, %s36
      %p40 = pneg %p34
      %p41 = scmp.eq.s32.totalorder %s25, 2
      %p42 = por %p40, %p41
      %p43 = scmp.ne.s32.totalorder %s35, %s38
      %p44 = scmp.eq.s32.totalorder %s25, 0
      %p45 = por %p43, %p44
      %p46 = scmp.ne.s32.totalorder %s35, %s38
      %p47 = scmp.eq.s32.totalorder %s30, 2
      %p48 = por %p46, %p47
      %p49 = scmp.ne.s32.totalorder %s38, %s39
      %p50 = scmp.eq.s32.totalorder %s30, 0
      %p51 = por %p49, %p50
      %p52 = scmp.ne.s32.totalorder %s38, %s39
      %p53 = scmp.eq.s32.totalorder %s31, 2
      %p54 = por %p52, %p53
      %p56 = scmp.ne.s32.totalorder %s39, %s55
      %p57 = scmp.eq.s32.totalorder %s31, 0
      %p58 = por %p56, %p57
      %s60 = sadd.s32 %s59, 1
      %p63 = scmp.eq.s32.totalorder %s25, 2
      %p64 = scmp.ne.s32.totalorder %s59, %s61
      %p65 = scmp.eq.s32.totalorder %s25, 0
      %p66 = por %p64, %p65
      %p67 = scmp.ne.s32.totalorder %s59, %s61
      %p68 = scmp.eq.s32.totalorder %s30, 2
      %p69 = por %p67, %p68
      %p70 = scmp.ne.s32.totalorder %s61, %s62
      %p71 = scmp.eq.s32.totalorder %s30, 0
      %p72 = por %p70, %p71
      %p73 = scmp.ne.s32.totalorder %s61, %s62
      %p74 = scmp.eq.s32.totalorder %s31, 2
      %p75 = por %p73, %p74
      %p77 = scmp.ne.s32.totalorder %s62, %s76
      %p78 = scmp.eq.s32.totalorder %s31, 0
      %p79 = por %p77, %p78
      %s81 = sadd.s32 %s80, 1
      %p84 = scmp.eq.s32.totalorder %s25, 2
      %p85 = scmp.ne.s32.totalorder %s80, %s82
      %p86 = scmp.eq.s32.totalorder %s25, 0
      %p87 = por %p85, %p86
      %p88 = scmp.ne.s32.totalorder %s80, %s82
      %p89 = scmp.eq.s32.totalorder %s30, 2
      %p90 = por %p88, %p89
      %p91 = scmp.ne.s32.totalorder %s82, %s83
      %p92 = scmp.eq.s32.totalorder %s30, 0
      %p93 = por %p91, %p92
      %p94 = scmp.ne.s32.totalorder %s82, %s83
      %p95 = scmp.eq.s32.totalorder %s31, 2
      %p96 = por %p94, %p95
      %p98 = scmp.ne.s32.totalorder %s83, %s97
      %p99 = scmp.eq.s32.totalorder %s31, 0
      %p100 = por %p98, %p99
      %s102 = sadd.s32 %s101, 1
      %p105 = scmp.eq.s32.totalorder %s25, 2
      %p106 = scmp.ne.s32.totalorder %s101, %s103
      %p107 = scmp.eq.s32.totalorder %s25, 0
      %p108 = por %p106, %p107
      %p109 = scmp.ne.s32.totalorder %s101, %s103
      %p110 = scmp.eq.s32.totalorder %s30, 2
      %p111 = por %p109, %p110
      %p112 = scmp.ne.s32.totalorder %s103, %s104
      %p113 = scmp.eq.s32.totalorder %s30, 0
      %p114 = por %p112, %p113
      %p115 = scmp.ne.s32.totalorder %s103, %s104
      %p116 = scmp.eq.s32.totalorder %s31, 2
      %p117 = por %p115, %p116
      %p119 = scmp.ne.s32.totalorder %s104, %s118
      %p120 = scmp.eq.s32.totalorder %s31, 0
      %p121 = por %p119, %p120
      %s123 = sadd.s32 %s122, 1
      %p126 = scmp.eq.s32.totalorder %s25, 2
      %p127 = scmp.ne.s32.totalorder %s122, %s124
      %p128 = scmp.eq.s32.totalorder %s25, 0
      %p129 = por %p127, %p128
      %p130 = scmp.ne.s32.totalorder %s122, %s124
      %p131 = scmp.eq.s32.totalorder %s30, 2
      %p132 = por %p130, %p131
      %p133 = scmp.ne.s32.totalorder %s124, %s125
      %p134 = scmp.eq.s32.totalorder %s30, 0
      %p135 = por %p133, %p134
      %p136 = scmp.ne.s32.totalorder %s124, %s125
      %p137 = scmp.eq.s32.totalorder %s31, 2
      %p138 = por %p136, %p137
      %p140 = scmp.ne.s32.totalorder %s125, %s139
      %p141 = scmp.eq.s32.totalorder %s31, 0
      %p142 = por %p140, %p141
      %s144 = sadd.s32 %s143, 1
      %p147 = scmp.eq.s32.totalorder %s25, 2
      %p148 = scmp.ne.s32.totalorder %s143, %s145
      %p149 = scmp.eq.s32.totalorder %s25, 0
      %p150 = por %p148, %p149
      %p151 = scmp.ne.s32.totalorder %s143, %s145
      %p152 = scmp.eq.s32.totalorder %s30, 2
      %p153 = por %p151, %p152
      %p154 = scmp.ne.s32.totalorder %s145, %s146
      %p155 = scmp.eq.s32.totalorder %s30, 0
      %p156 = por %p154, %p155
      %p157 = scmp.ne.s32.totalorder %s145, %s146
      %p158 = scmp.eq.s32.totalorder %s31, 2
      %p159 = por %p157, %p158
      %p161 = scmp.ne.s32.totalorder %s146, %s160
      %p162 = scmp.eq.s32.totalorder %s31, 0
      %p163 = por %p161, %p162
      %s165 = sadd.s32 %s164, 1
      %p168 = scmp.eq.s32.totalorder %s25, 2
      %p169 = scmp.ne.s32.totalorder %s164, %s166
      %p170 = scmp.eq.s32.totalorder %s25, 0
      %p171 = por %p169, %p170
      %p172 = scmp.ne.s32.totalorder %s164, %s166
      %p173 = scmp.eq.s32.totalorder %s30, 2
      %p174 = por %p172, %p173
      %p175 = scmp.ne.s32.totalorder %s166, %s167
      %p176 = scmp.eq.s32.totalorder %s30, 0
      %p177 = por %p175, %p176
      %p178 = scmp.ne.s32.totalorder %s166, %s167
      %p179 = scmp.eq.s32.totalorder %s31, 2
      %p180 = por %p178, %p179
      %p182 = scmp.ne.s32.totalorder %s167, %s181
      %p183 = scmp.eq.s32.totalorder %s31, 0
      %p184 = por %p182, %p183
      %s186 = sadd.s32 %s185, 1
      %p189 = scmp.eq.s32.totalorder %s25, 2
      %p190 = scmp.ne.s32.totalorder %s185, %s187
      %p191 = scmp.eq.s32.totalorder %s25, 0
      %p192 = por %p190, %p191
      %p193 = scmp.ne.s32.totalorder %s185, %s187
      %p194 = scmp.eq.s32.totalorder %s30, 2
      %p195 = por %p193, %p194
      %p196 = scmp.ne.s32.totalorder %s187, %s188
      %p197 = scmp.eq.s32.totalorder %s30, 0
      %p198 = por %p196, %p197
      %p199 = scmp.ne.s32.totalorder %s187, %s188
      %p200 = scmp.eq.s32.totalorder %s31, 2
      %p201 = por %p199, %p200
      %p203 = scmp.ne.s32.totalorder %s188, %s202
      %p204 = scmp.eq.s32.totalorder %s31, 0
      %p205 = por %p203, %p204
      %s207 = sadd.s32 %s206, 1
      %p210 = scmp.eq.s32.totalorder %s25, 2
      %p211 = scmp.ne.s32.totalorder %s206, %s208
      %p212 = scmp.eq.s32.totalorder %s25, 0
      %p213 = por %p211, %p212
      %p214 = scmp.ne.s32.totalorder %s206, %s208
      %p215 = scmp.eq.s32.totalorder %s30, 2
      %p216 = por %p214, %p215
      %p217 = scmp.ne.s32.totalorder %s208, %s209
      %p218 = scmp.eq.s32.totalorder %s30, 0
      %p219 = por %p217, %p218
      %p220 = scmp.ne.s32.totalorder %s208, %s209
      %p221 = scmp.eq.s32.totalorder %s31, 2
      %p222 = por %p220, %p221
      %p224 = scmp.ne.s32.totalorder %s209, %s223
      %p225 = scmp.eq.s32.totalorder %s31, 0
      %p226 = por %p224, %p225
      %s227 = ssub.s32 %s25, %s32
      %p228 = scmp.eq.s32.totalorder %s227, 0
      %s230 = sadd.s32 %s229, 1
      %s231 = scalar_select %p228, %s229, %s230
      %p234 = pneg %p228
      %p235 = scmp.eq.s32.totalorder %s25, 2
      %p236 = por %p234, %p235
      %p237 = scmp.ne.s32.totalorder %s229, %s232
      %p238 = scmp.eq.s32.totalorder %s25, 0
      %p239 = por %p237, %p238
      %p240 = scmp.ne.s32.totalorder %s229, %s232
      %p241 = scmp.eq.s32.totalorder %s30, 2
      %p242 = por %p240, %p241
      %p243 = scmp.ne.s32.totalorder %s232, %s233
      %p244 = scmp.eq.s32.totalorder %s30, 0
      %p245 = por %p243, %p244
      %p246 = scmp.ne.s32.totalorder %s232, %s233
      %p247 = scmp.eq.s32.totalorder %s31, 2
      %p248 = por %p246, %p247
      %p250 = scmp.ne.s32.totalorder %s233, %s249
      %p251 = scmp.eq.s32.totalorder %s31, 0
      %p252 = por %p250, %p251
      %p253 = scmp.le.s32.totalorder 1, %s25
      %p254 = scmp.lt.s32.totalorder %s25, 4
      %p255 = pnand %p253, %p254
      %p256 = pneg %p255
      // Predicated region
      $region9: #{tpu_custom_call.1} parent=5 // pred_check
        _
      $region10: #{tpu_custom_call.1} parent=5 // pred_check_branch
        %258 = sbr.rel (%p255) target = $region12
      $region11: #{tpu_custom_call.1} parent=5 // pred_region
        %s259 = ssub.s32 %s25, 1
        // Predicated region
        $region13: #{tpu_custom_call.1} parent=11 // pred_check
          %p260 = pneg %p72
        $region14: #{tpu_custom_call.1} parent=11 // pred_check_branch
          %262 = sbr.rel (%p260) target = $region16
        $region15: #{tpu_custom_call.1} parent=11 // pred_region
          %264 = vsyncadd [#allocation8], 0
          %s265 = sshll.u32 %s2, 4
          %s266 = int_to_ptr.hbm [resolvable:$true] %s265
          %s267 = sshll.u32 [#allocation7], 4
          %s268 = int_to_ptr.vmem [resolvable:$true] %s267
          %273 = dma.hbm_to_vmem [thread:$0]  %s266, 1024, %s268, [#allocation8], 64, 64, 4
        $region16: #{tpu_custom_call.1} parent=11 // pred_fallthru
          _
        // Predicated region
        $region17: #{tpu_custom_call.1} parent=11 // pred_check
          %p274 = pneg %p93
        $region18: #{tpu_custom_call.1} parent=11 // pred_check_branch
          %276 = sbr.rel (%p274) target = $region20
        $region19: #{tpu_custom_call.1} parent=11 // pred_region
          _
        $region20: #{tpu_custom_call.1} parent=11 // pred_fallthru
          _
        // Predicated region
        $region21: #{tpu_custom_call.1} parent=11 // pred_check
          %p277 = pneg %p114
        $region22: #{tpu_custom_call.1} parent=11 // pred_check_branch
          %279 = sbr.rel (%p277) target = $region24
        $region23: #{tpu_custom_call.1} parent=11 // pred_region
          %281 = vsyncadd [#allocation8], 0
          %s282 = sshll.u32 %s4, 4
          %s283 = int_to_ptr.hbm [resolvable:$true] %s282
          %s284 = sshll.u32 [#allocation9], 4
          %s285 = int_to_ptr.vmem [resolvable:$true] %s284
          %290 = dma.hbm_to_vmem [thread:$0]  %s283, 1024, %s285, [#allocation8], 64, 64, 4
        $region24: #{tpu_custom_call.1} parent=11 // pred_fallthru
          _
        // Predicated region
        $region25: #{tpu_custom_call.1} parent=11 // pred_check
          %p291 = pneg %p135
        $region26: #{tpu_custom_call.1} parent=11 // pred_check_branch
          %293 = sbr.rel (%p291) target = $region28
        $region27: #{tpu_custom_call.1} parent=11 // pred_region
          _
        $region28: #{tpu_custom_call.1} parent=11 // pred_fallthru
          _
        // Predicated region
        $region29: #{tpu_custom_call.1} parent=11 // pred_check
          %p294 = pneg %p156
        $region30: #{tpu_custom_call.1} parent=11 // pred_check_branch
          %296 = sbr.rel (%p294) target = $region32
        $region31: #{tpu_custom_call.1} parent=11 // pred_region
          %298 = vsyncadd [#allocation11], 0
          %s299 = sshll.u32 %s6, 4
          %s300 = int_to_ptr.hbm [resolvable:$true] %s299
          %s301 = sshll.u32 [#allocation10], 4
          %s302 = int_to_ptr.vmem [resolvable:$true] %s301
          %307 = dma.hbm_to_vmem [thread:$0]  %s300, 1024, %s302, [#allocation11], 64, 64, 4
        $region32: #{tpu_custom_call.1} parent=11 // pred_fallthru
          _
        // Predicated region
        $region33: #{tpu_custom_call.1} parent=11 // pred_check
          %p308 = pneg %p177
        $region34: #{tpu_custom_call.1} parent=11 // pred_check_branch
          %310 = sbr.rel (%p308) target = $region36
        $region35: #{tpu_custom_call.1} parent=11 // pred_region
          _
        $region36: #{tpu_custom_call.1} parent=11 // pred_fallthru
          _
        // Predicated region
        $region37: #{tpu_custom_call.1} parent=11 // pred_check
          %p311 = pneg %p198
        $region38: #{tpu_custom_call.1} parent=11 // pred_check_branch
          %313 = sbr.rel (%p311) target = $region40
        $region39: #{tpu_custom_call.1} parent=11 // pred_region
          %315 = vsyncadd [#allocation11], 0
          %s316 = sshll.u32 %s8, 4
          %s317 = int_to_ptr.hbm [resolvable:$true] %s316
          %s318 = sshll.u32 [#allocation12], 4
          %s319 = int_to_ptr.vmem [resolvable:$true] %s318
          %324 = dma.hbm_to_vmem [thread:$0]  %s317, 1024, %s319, [#allocation11], 64, 64, 4
        $region40: #{tpu_custom_call.1} parent=11 // pred_fallthru
          _
        // Predicated region
        $region41: #{tpu_custom_call.1} parent=11 // pred_check
          %p325 = pneg %p219
        $region42: #{tpu_custom_call.1} parent=11 // pred_check_branch
          %327 = sbr.rel (%p325) target = $region44
        $region43: #{tpu_custom_call.1} parent=11 // pred_region
          _
        $region44: #{tpu_custom_call.1} parent=11 // pred_fallthru
          _
      $region12: #{tpu_custom_call.1} parent=5 // pred_fallthru
        _
      %p328 = scmp.lt.s32.totalorder %s25, 3
      // Predicated region
      $region45: #{tpu_custom_call.1} parent=5 // pred_check
        %p329 = pneg %p328
      $region46: #{tpu_custom_call.1} parent=5 // pred_check_branch
        %331 = sbr.rel (%p329) target = $region48
      $region47: #{tpu_custom_call.1} parent=5 // pred_region
        // Predicated region
        $region49: #{tpu_custom_call.1} parent=47 // pred_check
          %p332 = pneg %p45
        $region50: #{tpu_custom_call.1} parent=47 // pred_check_branch
          %334 = sbr.rel (%p332) target = $region52
        $region51: #{tpu_custom_call.1} parent=47 // pred_region
          %s335 = sand.u32 %s35, 1
          %s336 = scalar_lea.sflag [#allocation5], %s335
          %s337 = sand.u32 %s35, 1
          %s338 = smul.addr %s337, 16
          %s339 = scalar_lea.vmem [#allocation4], %s338
          %s340 = smul.u32 2, %s25
          %342 = vsyncadd %s336, 0
          %s343 = smul.addr %s340, 8
          %s344 = scalar_lea.hbm %s1, %s343
          %s345 = sshll.u32 %s344, 4
          %s346 = int_to_ptr.hbm [resolvable:$true] %s345
          %s347 = sshll.u32 %s339, 4
          %s348 = int_to_ptr.vmem [resolvable:$true] %s347
          %353 = dma.hbm_to_vmem [thread:$0]  %s346, 256, %s348, %s336, 128, 128, 8
        $region52: #{tpu_custom_call.1} parent=47 // pred_fallthru
          _
      $region48: #{tpu_custom_call.1} parent=5 // pred_fallthru
        _
      %p354 = scmp.le.s32.totalorder 1, %s25
      %p355 = scmp.lt.s32.totalorder %s25, 4
      %p356 = pnand %p354, %p355
      %p357 = pneg %p356
      // Predicated region
      $region53: #{tpu_custom_call.1} parent=5 // pred_check
        _
      $region54: #{tpu_custom_call.1} parent=5 // pred_check_branch
        %359 = sbr.rel (%p356) target = $region56
      $region55: #{tpu_custom_call.1} parent=5 // pred_region
        %s360 = ssub.s32 %s25, 1
        %s361 = sand.u32 %s38, 1
        %s362 = scalar_lea.sflag [#allocation5], %s361
        %s363 = sand.u32 %s38, 1
        %s364 = smul.addr %s363, 16
        %s365 = scalar_lea.vmem [#allocation4], %s364
        // Predicated region
        $region57: #{tpu_custom_call.1} parent=55 // pred_check
          %p366 = pneg %p51
        $region58: #{tpu_custom_call.1} parent=55 // pred_check_branch
          %368 = sbr.rel (%p366) target = $region60
        $region59: #{tpu_custom_call.1} parent=55 // pred_region
          %370 = dma.done %s362, 256
        $region60: #{tpu_custom_call.1} parent=55 // pred_fallthru
          _
        // Predicated region
        $region61: #{tpu_custom_call.1} parent=55 // pred_check
          %p371 = pneg %p72
        $region62: #{tpu_custom_call.1} parent=55 // pred_check_branch
          %373 = sbr.rel (%p371) target = $region64
        $region63: #{tpu_custom_call.1} parent=55 // pred_region
          %375 = dma.done [#allocation8], 1024
        $region64: #{tpu_custom_call.1} parent=55 // pred_fallthru
          _
        // Predicated region
        $region65: #{tpu_custom_call.1} parent=55 // pred_check
          %p376 = pneg %p114
        $region66: #{tpu_custom_call.1} parent=55 // pred_check_branch
          %378 = sbr.rel (%p376) target = $region68
        $region67: #{tpu_custom_call.1} parent=55 // pred_region
          %380 = dma.done [#allocation8], 1024
        $region68: #{tpu_custom_call.1} parent=55 // pred_fallthru
          _
        // Predicated region
        $region69: #{tpu_custom_call.1} parent=55 // pred_check
          %p381 = pneg %p156
        $region70: #{tpu_custom_call.1} parent=55 // pred_check_branch
          %383 = sbr.rel (%p381) target = $region72
        $region71: #{tpu_custom_call.1} parent=55 // pred_region
          %385 = dma.done [#allocation11], 1024
        $region72: #{tpu_custom_call.1} parent=55 // pred_fallthru
          _
        // Predicated region
        $region73: #{tpu_custom_call.1} parent=55 // pred_check
          %p386 = pneg %p198
        $region74: #{tpu_custom_call.1} parent=55 // pred_check_branch
          %388 = sbr.rel (%p386) target = $region76
        $region75: #{tpu_custom_call.1} parent=55 // pred_region
          %390 = dma.done [#allocation11], 1024
        $region76: #{tpu_custom_call.1} parent=55 // pred_fallthru
          _
        %s391 = sand.u32 %s38, 1
        %s392 = scalar_lea.sflag [#allocation5], %s391
        %s393 = sand.u32 %s38, 1
        %s394 = smul.addr %s393, 16
        %s395 = scalar_lea.vmem [#allocation4], %s394
        %p396 = pneg %p51
        %p397 = pneg %p48
        %p398 = pneg %p72
        %p399 = pneg %p69
        %p400 = pneg %p93
        %p401 = pneg %p90
        %p402 = pneg %p114
        %p403 = pneg %p111
        %p404 = pneg %p135
        %p405 = pneg %p132
        %p406 = pneg %p156
        %p407 = pneg %p153
        %p408 = pneg %p177
        %p409 = pneg %p174
        %p410 = pneg %p198
        %p411 = pneg %p195
        %p412 = pneg %p219
        %p413 = pneg %p216
        %p414 = pneg %p245
        %p415 = pneg %p242
        %s416 = sand.u32 %s232, 1
        %s417 = scalar_lea.sflag [#allocation6], %s416
        %s418 = sand.u32 %s232, 1
        %s419 = smul.addr %s418, 16
        %s420 = scalar_lea.vmem [#allocation13], %s419
        %s421 = smul.u32 2, %s30
        %s422 = smul.u32 2, %s30
        %v423 = vld [vmem:[%s365] sm:$0xff]
        %v424 = vld [vmem:[%s365 + $0x8] sm:$0xff]
        %v425 = vpack.c.bf16 %v424, %v423
        %v426 = vld [vmem:[#allocation7] sm:$0xf]
        %v427 = vld [vmem:[#allocation7 + $0x4] sm:$0xf]
        %v428 = vld [vmem:[#allocation7 + $0x8] sm:$0xf]
        %v429 = vld [vmem:[#allocation7 + $0xc] sm:$0xf]
        %v430 = vld [vmem:[#allocation7 + $0x10] sm:$0xf]
        %v431 = vld [vmem:[#allocation7 + $0x14] sm:$0xf]
        %v432 = vld [vmem:[#allocation7 + $0x18] sm:$0xf]
        %v433 = vld [vmem:[#allocation7 + $0x1c] sm:$0xf]
        %v434 = vld [vmem:[#allocation7 + $0x20] sm:$0xf]
        %v435 = vld [vmem:[#allocation7 + $0x24] sm:$0xf]
        %v436 = vld [vmem:[#allocation7 + $0x28] sm:$0xf]
        %v437 = vld [vmem:[#allocation7 + $0x2c] sm:$0xf]
        %v438 = vld [vmem:[#allocation7 + $0x30] sm:$0xf]
        %v439 = vld [vmem:[#allocation7 + $0x34] sm:$0xf]
        %v440 = vld [vmem:[#allocation7 + $0x38] sm:$0xf]
        %v441 = vld [vmem:[#allocation7 + $0x3c] sm:$0xf]
        %v442 = vld [vmem:[%s3] sm:$0x1]
        %v444 = vperm.slane %v442, 0
        %v462 = vunpack.c.l.b16 %v426
        %v463 = vunpack.c.l.b16 %v427
        %v464 = vunpack.c.l.b16 %v428
        %v465 = vunpack.c.l.b16 %v429
        %v466 = vunpack.c.l.b16 %v430
        %v467 = vunpack.c.l.b16 %v431
        %v468 = vunpack.c.l.b16 %v432
        %v469 = vunpack.c.l.b16 %v433
        %v470 = vunpack.c.l.b16 %v434
        %v471 = vunpack.c.l.b16 %v435
        %v472 = vunpack.c.l.b16 %v436
        %v473 = vunpack.c.l.b16 %v437
        %v474 = vunpack.c.l.b16 %v438
        %v475 = vunpack.c.l.b16 %v439
        %v476 = vunpack.c.l.b16 %v440
        %v477 = vunpack.c.l.b16 %v441
        %v478 = vpack.c.b16 %v463, %v462
        %v479 = vpack.c.b16 %v465, %v464
        %v480 = vpack.c.b16 %v467, %v466
        %v481 = vpack.c.b16 %v469, %v468
        %v482 = vpack.c.b16 %v471, %v470
        %v483 = vpack.c.b16 %v473, %v472
        %v484 = vpack.c.b16 %v475, %v474
        %v485 = vpack.c.b16 %v477, %v476
        %494 = vmatpush.bf16.msra.mxu0 %v485
        %495 = vmatpush.bf16.msra.mxu0 %v484
        %496 = vmatpush.bf16.msra.mxu0 %v483
        %497 = vmatpush.bf16.msra.mxu0 %v482
        %498 = vmatpush.bf16.msra.mxu0 %v481
        %499 = vmatpush.bf16.msra.mxu0 %v480
        %500 = vmatpush.bf16.msra.mxu0 %v479
        %501 = vmatpush.bf16.msra.mxu0 %v478
        %502 = vmatmul.bf16.gmra.mxu0 %v425
        %v503 = vpop.f32.mrf.mxu0
        %v504 = vadd.f32 %v444, %v503
        %v505 = vpop.f32.mrf.mxu0
        %v506 = vadd.f32 %v444, %v505
        %507 = vdwg.mxu0
        %v508 = vmax.f32 %v504, 0.0
        %v509 = vmax.f32 %v506, 0.0
        %v510 = vpack.c.bf16 %v509, %v508
        %v511 = vld [vmem:[#allocation9] sm:$0xf]
        %v512 = vld [vmem:[#allocation9 + $0x4] sm:$0xf]
        %v513 = vld [vmem:[#allocation9 + $0x8] sm:$0xf]
        %v514 = vld [vmem:[#allocation9 + $0xc] sm:$0xf]
        %v515 = vld [vmem:[#allocation9 + $0x10] sm:$0xf]
        %v516 = vld [vmem:[#allocation9 + $0x14] sm:$0xf]
        %v517 = vld [vmem:[#allocation9 + $0x18] sm:$0xf]
        %v518 = vld [vmem:[#allocation9 + $0x1c] sm:$0xf]
        %v519 = vld [vmem:[#allocation9 + $0x20] sm:$0xf]
        %v520 = vld [vmem:[#allocation9 + $0x24] sm:$0xf]
        %v521 = vld [vmem:[#allocation9 + $0x28] sm:$0xf]
        %v522 = vld [vmem:[#allocation9 + $0x2c] sm:$0xf]
        %v523 = vld [vmem:[#allocation9 + $0x30] sm:$0xf]
        %v524 = vld [vmem:[#allocation9 + $0x34] sm:$0xf]
        %v525 = vld [vmem:[#allocation9 + $0x38] sm:$0xf]
        %v526 = vld [vmem:[#allocation9 + $0x3c] sm:$0xf]
        %v527 = vld [vmem:[%s5] sm:$0x1]
        %v529 = vperm.slane %v527, 0
        %v547 = vunpack.c.l.b16 %v511
        %v548 = vunpack.c.l.b16 %v512
        %v549 = vunpack.c.l.b16 %v513
        %v550 = vunpack.c.l.b16 %v514
        %v551 = vunpack.c.l.b16 %v515
        %v552 = vunpack.c.l.b16 %v516
        %v553 = vunpack.c.l.b16 %v517
        %v554 = vunpack.c.l.b16 %v518
        %v555 = vunpack.c.l.b16 %v519
        %v556 = vunpack.c.l.b16 %v520
        %v557 = vunpack.c.l.b16 %v521
        %v558 = vunpack.c.l.b16 %v522
        %v559 = vunpack.c.l.b16 %v523
        %v560 = vunpack.c.l.b16 %v524
        %v561 = vunpack.c.l.b16 %v525
        %v562 = vunpack.c.l.b16 %v526
        %v563 = vpack.c.b16 %v548, %v547
        %v564 = vpack.c.b16 %v550, %v549
        %v565 = vpack.c.b16 %v552, %v551
        %v566 = vpack.c.b16 %v554, %v553
        %v567 = vpack.c.b16 %v556, %v555
        %v568 = vpack.c.b16 %v558, %v557
        %v569 = vpack.c.b16 %v560, %v559
        %v570 = vpack.c.b16 %v562, %v561
        %579 = vmatpush.bf16.msra.mxu0 %v570
        %580 = vmatpush.bf16.msra.mxu0 %v569
        %581 = vmatpush.bf16.msra.mxu0 %v568
        %582 = vmatpush.bf16.msra.mxu0 %v567
        %583 = vmatpush.bf16.msra.mxu0 %v566
        %584 = vmatpush.bf16.msra.mxu0 %v565
        %585 = vmatpush.bf16.msra.mxu0 %v564
        %586 = vmatpush.bf16.msra.mxu0 %v563
        %587 = vmatmul.bf16.gmra.mxu0 %v510
        %v588 = vpop.f32.mrf.mxu0
        %v589 = vadd.f32 %v529, %v588
        %v590 = vpop.f32.mrf.mxu0
        %v591 = vadd.f32 %v529, %v590
        %592 = vdwg.mxu0
        %v593 = vmax.f32 %v589, 0.0
        %v594 = vmax.f32 %v591, 0.0
        %v595 = vpack.c.bf16 %v594, %v593
        %v596 = vld [vmem:[#allocation10] sm:$0xf]
        %v597 = vld [vmem:[#allocation10 + $0x4] sm:$0xf]
        %v598 = vld [vmem:[#allocation10 + $0x8] sm:$0xf]
        %v599 = vld [vmem:[#allocation10 + $0xc] sm:$0xf]
        %v600 = vld [vmem:[#allocation10 + $0x10] sm:$0xf]
        %v601 = vld [vmem:[#allocation10 + $0x14] sm:$0xf]
        %v602 = vld [vmem:[#allocation10 + $0x18] sm:$0xf]
        %v603 = vld [vmem:[#allocation10 + $0x1c] sm:$0xf]
        %v604 = vld [vmem:[#allocation10 + $0x20] sm:$0xf]
        %v605 = vld [vmem:[#allocation10 + $0x24] sm:$0xf]
        %v606 = vld [vmem:[#allocation10 + $0x28] sm:$0xf]
        %v607 = vld [vmem:[#allocation10 + $0x2c] sm:$0xf]
        %v608 = vld [vmem:[#allocation10 + $0x30] sm:$0xf]
        %v609 = vld [vmem:[#allocation10 + $0x34] sm:$0xf]
        %v610 = vld [vmem:[#allocation10 + $0x38] sm:$0xf]
        %v611 = vld [vmem:[#allocation10 + $0x3c] sm:$0xf]
        %v612 = vld [vmem:[%s7] sm:$0x1]
        %v614 = vperm.slane %v612, 0
        %v632 = vunpack.c.l.b16 %v596
        %v633 = vunpack.c.l.b16 %v597
        %v634 = vunpack.c.l.b16 %v598
        %v635 = vunpack.c.l.b16 %v599
        %v636 = vunpack.c.l.b16 %v600
        %v637 = vunpack.c.l.b16 %v601
        %v638 = vunpack.c.l.b16 %v602
        %v639 = vunpack.c.l.b16 %v603
        %v640 = vunpack.c.l.b16 %v604
        %v641 = vunpack.c.l.b16 %v605
        %v642 = vunpack.c.l.b16 %v606
        %v643 = vunpack.c.l.b16 %v607
        %v644 = vunpack.c.l.b16 %v608
        %v645 = vunpack.c.l.b16 %v609
        %v646 = vunpack.c.l.b16 %v610
        %v647 = vunpack.c.l.b16 %v611
        %v648 = vpack.c.b16 %v633, %v632
        %v649 = vpack.c.b16 %v635, %v634
        %v650 = vpack.c.b16 %v637, %v636
        %v651 = vpack.c.b16 %v639, %v638
        %v652 = vpack.c.b16 %v641, %v640
        %v653 = vpack.c.b16 %v643, %v642
        %v654 = vpack.c.b16 %v645, %v644
        %v655 = vpack.c.b16 %v647, %v646
        %664 = vmatpush.bf16.msra.mxu0 %v655
        %665 = vmatpush.bf16.msra.mxu0 %v654
        %666 = vmatpush.bf16.msra.mxu0 %v653
        %667 = vmatpush.bf16.msra.mxu0 %v652
        %668 = vmatpush.bf16.msra.mxu0 %v651
        %669 = vmatpush.bf16.msra.mxu0 %v650
        %670 = vmatpush.bf16.msra.mxu0 %v649
        %671 = vmatpush.bf16.msra.mxu0 %v648
        %672 = vmatmul.bf16.gmra.mxu0 %v595
        %v673 = vpop.f32.mrf.mxu0
        %v674 = vadd.f32 %v614, %v673
        %v675 = vpop.f32.mrf.mxu0
        %v676 = vadd.f32 %v614, %v675
        %677 = vdwg.mxu0
        %v678 = vmax.f32 %v674, 0.0
        %v679 = vmax.f32 %v676, 0.0
        %v680 = vpack.c.bf16 %v679, %v678
        %v681 = vld [vmem:[#allocation12] sm:$0xf]
        %v682 = vld [vmem:[#allocation12 + $0x4] sm:$0xf]
        %v683 = vld [vmem:[#allocation12 + $0x8] sm:$0xf]
        %v684 = vld [vmem:[#allocation12 + $0xc] sm:$0xf]
        %v685 = vld [vmem:[#allocation12 + $0x10] sm:$0xf]
        %v686 = vld [vmem:[#allocation12 + $0x14] sm:$0xf]
        %v687 = vld [vmem:[#allocation12 + $0x18] sm:$0xf]
        %v688 = vld [vmem:[#allocation12 + $0x1c] sm:$0xf]
        %v689 = vld [vmem:[#allocation12 + $0x20] sm:$0xf]
        %v690 = vld [vmem:[#allocation12 + $0x24] sm:$0xf]
        %v691 = vld [vmem:[#allocation12 + $0x28] sm:$0xf]
        %v692 = vld [vmem:[#allocation12 + $0x2c] sm:$0xf]
        %v693 = vld [vmem:[#allocation12 + $0x30] sm:$0xf]
        %v694 = vld [vmem:[#allocation12 + $0x34] sm:$0xf]
        %v695 = vld [vmem:[#allocation12 + $0x38] sm:$0xf]
        %v696 = vld [vmem:[#allocation12 + $0x3c] sm:$0xf]
        %v697 = vld [vmem:[%s9] sm:$0x1]
        %v699 = vperm.slane %v697, 0
        %v717 = vunpack.c.l.b16 %v681
        %v718 = vunpack.c.l.b16 %v682
        %v719 = vunpack.c.l.b16 %v683
        %v720 = vunpack.c.l.b16 %v684
        %v721 = vunpack.c.l.b16 %v685
        %v722 = vunpack.c.l.b16 %v686
        %v723 = vunpack.c.l.b16 %v687
        %v724 = vunpack.c.l.b16 %v688
        %v725 = vunpack.c.l.b16 %v689
        %v726 = vunpack.c.l.b16 %v690
        %v727 = vunpack.c.l.b16 %v691
        %v728 = vunpack.c.l.b16 %v692
        %v729 = vunpack.c.l.b16 %v693
        %v730 = vunpack.c.l.b16 %v694
        %v731 = vunpack.c.l.b16 %v695
        %v732 = vunpack.c.l.b16 %v696
        %v733 = vpack.c.b16 %v718, %v717
        %v734 = vpack.c.b16 %v720, %v719
        %v735 = vpack.c.b16 %v722, %v721
        %v736 = vpack.c.b16 %v724, %v723
        %v737 = vpack.c.b16 %v726, %v725
        %v738 = vpack.c.b16 %v728, %v727
        %v739 = vpack.c.b16 %v730, %v729
        %v740 = vpack.c.b16 %v732, %v731
        %749 = vmatpush.bf16.msra.mxu0 %v740
        %750 = vmatpush.bf16.msra.mxu0 %v739
        %751 = vmatpush.bf16.msra.mxu0 %v738
        %752 = vmatpush.bf16.msra.mxu0 %v737
        %753 = vmatpush.bf16.msra.mxu0 %v736
        %754 = vmatpush.bf16.msra.mxu0 %v735
        %755 = vmatpush.bf16.msra.mxu0 %v734
        %756 = vmatpush.bf16.msra.mxu0 %v733
        %757 = vmatmul.bf16.gmra.mxu0 %v680
        %v758 = vpop.f32.mrf.mxu0
        %v759 = vadd.f32 %v699, %v758
        %v760 = vpop.f32.mrf.mxu0
        %v761 = vadd.f32 %v699, %v760
        %762 = vdwg.mxu0
        %763 = vst [vmem:[%s420] sm:$0xff] %v759
        %764 = vst [vmem:[%s420 + $0x8] sm:$0xff] %v761
        %s765 = sand.u32 %s232, 1
        %s766 = scalar_lea.sflag [#allocation6], %s765
        %s767 = sand.u32 %s232, 1
        %s768 = smul.addr %s767, 16
        %s769 = scalar_lea.vmem [#allocation13], %s768
        // Predicated region
        $region77: #{tpu_custom_call.1} parent=55 // pred_check
          %p770 = pneg %p242
        $region78: #{tpu_custom_call.1} parent=55 // pred_check_branch
          %772 = sbr.rel (%p770) target = $region80
        $region79: #{tpu_custom_call.1} parent=55 // pred_region
          %s773 = smul.u32 2, %s30
          %775 = vsyncadd %s766, 0
          %s776 = smul.addr %s773, 8
          %s777 = scalar_lea.hbm %s10, %s776
          %s778 = sshll.u32 %s769, 4
          %s779 = int_to_ptr.vmem [resolvable:$true] %s778
          %s780 = sshll.u32 %s777, 4
          %s781 = int_to_ptr.hbm [resolvable:$true] %s780
          %786 = dma.vmem_to_hbm [thread:$0]  %s779, 256, %s781, %s766, 128, 128, 8
        $region80: #{tpu_custom_call.1} parent=55 // pred_fallthru
          _
      $region56: #{tpu_custom_call.1} parent=5 // pred_fallthru
        _
      %p787 = scmp.le.s32.totalorder 2, %s25
      // Predicated region
      $region81: #{tpu_custom_call.1} parent=5 // pred_check
        %p788 = pneg %p787
      $region82: #{tpu_custom_call.1} parent=5 // pred_check_branch
        %790 = sbr.rel (%p788) target = $region84
      $region83: #{tpu_custom_call.1} parent=5 // pred_region
        %s791 = ssub.s32 %s25, 2
        // Predicated region
        $region85: #{tpu_custom_call.1} parent=83 // pred_check
          %p792 = pneg %p248
        $region86: #{tpu_custom_call.1} parent=83 // pred_check_branch
          %794 = sbr.rel (%p792) target = $region88
        $region87: #{tpu_custom_call.1} parent=83 // pred_region
          %s795 = sand.u32 %s233, 1
          %s796 = scalar_lea.sflag [#allocation6], %s795
          %s797 = sand.u32 %s233, 1
          %s798 = smul.addr %s797, 16
          %s799 = scalar_lea.vmem [#allocation13], %s798
          %801 = dma.done %s796, 256
        $region88: #{tpu_custom_call.1} parent=83 // pred_fallthru
          _
      $region84: #{tpu_custom_call.1} parent=5 // pred_fallthru
        _
    $region6: #{tpu_custom_call.1} parent=1 // loop_footer
      %s29 = sadd.s32 1, %s25
    $region7: #{tpu_custom_call.1} parent=1 // loop_footer_branch
      %24 = sbr.rel target = $region3
    $region8: #{tpu_custom_call.1} parent=1 // loop_exit
      _
    %802 = vsyncpa [#allocation5], 1
    %s803 = scalar_lea.sflag [#allocation5], 1
    %804 = vsyncpa %s803, 1
    %805 = vsyncpa [#allocation8], 1
    %806 = vsyncpa [#allocation11], 1
    %807 = vsyncpa [#allocation6], 1
    %s808 = scalar_lea.sflag [#allocation6], 1
    %809 = vsyncpa %s808, 1

</llo_original>
